<compile_context>
chip_gen: v6e
topology: v6e:2x2x1
jax: 0.10.0
libtpu: 0.0.40
codegen_flags: <defaults>
</compile_context>

<pallas_src>
import functools

import jax
import jax.numpy as jnp
from jax import lax
from jax.experimental import pallas as pl
from jax.experimental.pallas import tpu as pltpu

EPS = 1e-8

# ----------------------------- config (synthetic "args") -----------------------------
N_AGENTS = 4
N_ACTIONS = 6
STATE_NUM = 5                       # args.env_args['state_num']
STATE_DIM = N_AGENTS                # prod(state_shape); discrete per-agent state index
EMBED_DIM = 32                      # args.mixing_embed_dim
Q_MIN, Q_MAX = -10.0, 10.0          # args.q_min / args.q_max
LOGDET_COEF = 1.0
NOISE_COEF = 0.1
BIAS_BASE = STATE_NUM * N_ACTIONS   # 30 embedding rows per agent (discrete branch)
NUM_EMB = N_AGENTS * BIAS_BASE      # 120 embedding rows total
E_PAD = ((BIAS_BASE + 7) // 8) * 8  # per-agent one-hot height, padded to a sublane multiple (32)


def _sym_det(m):
    """Determinant of a small matrix given as list-of-lists of (1, T) arrays.

    The 4x4 case (the common n_agents) is a CSE'd Laplace expansion: the six unique
    2x2 minors of rows {2,3} are computed once and reused by all four 3x3 cofactors.
    """
    n = len(m)
    if n == 1:
        return m[0][0]
    if n == 2:
        return m[0][0] * m[1][1] - m[0][1] * m[1][0]
    if n == 3:
        return (m[0][0] * (m[1][1] * m[2][2] - m[1][2] * m[2][1])
                - m[0][1] * (m[1][0] * m[2][2] - m[1][2] * m[2][0])
                + m[0][2] * (m[1][0] * m[2][1] - m[1][1] * m[2][0]))
    if n == 4:
        def minor2(a, b):  # 2x2 minor of rows {2,3}, columns a < b
            return m[2][a] * m[3][b] - m[2][b] * m[3][a]
        m01, m02, m03 = minor2(0, 1), minor2(0, 2), minor2(0, 3)
        m12, m13, m23 = minor2(1, 2), minor2(1, 3), minor2(2, 3)
        c0 = m[1][1] * m23 - m[1][2] * m13 + m[1][3] * m12
        c1 = m[1][0] * m23 - m[1][2] * m03 + m[1][3] * m02
        c2 = m[1][0] * m13 - m[1][1] * m03 + m[1][3] * m01
        c3 = m[1][0] * m12 - m[1][1] * m02 + m[1][2] * m01
        return m[0][0] * c0 - m[0][1] * c1 + m[0][2] * c2 - m[0][3] * c3
    # Generic Laplace fallback for other agent counts.
    det = None
    for j in range(n):
        sub = [[m[r][c] for c in range(n) if c != j] for r in range(1, n)]
        term = m[0][j] * _sym_det(sub)
        if j % 2 == 1:
            term = -term
        det = term if det is None else det + term
    return det


def qdpp_mixer_kernel(table_ref, idx_ref, qs_ref, noise_ref, out_ref):
    """One tile of TILE batch rows, batch on the lane axis.

    table_ref: (N_AGENTS, EMBED_DIM, E_PAD) f32  per-agent pre-normalized table blocks,
                                                 table_ref[a] = W[a*30:(a+1)*30].T (zero-padded)
    idx_ref:   (N_AGENTS, TILE) i32  per-agent LOCAL embedding indices in [0, BIAS_BASE)
    qs_ref:    (N_AGENTS, TILE) f32  raw agent qs (clamped in-kernel)
    noise_ref: (N_AGENTS, TILE) f32  uniform[0,1) diagonal noise
    out_ref:   (1, TILE)        f32  mixed q (lane-dense store)
    """
    idx = idx_ref[...]                                                 # (A, T) int32
    tile = idx.shape[1]

    # --- per-agent 32-row one-hot gather: compares on the VPU, gather matmul on the MXU ---
    row_iota = lax.broadcasted_iota(jnp.int32, (E_PAD, tile), 0)       # (32, T)
    b = []
    for i in range(N_AGENTS):
        onehot = (row_iota == idx[i:i + 1, :]).astype(jnp.float32)     # (32, T) exact 0/1
        # (D, 32) @ (32, T) -> (D, T): gathered (already-normalized) embedding for agent i.
        b.append(jnp.dot(table_ref[i], onehot, preferred_element_type=jnp.float32))

    # --- Gram entries: elementwise mul + sublane reduce, all (1, T) lane-dense ---
    # Table rows are pre-L2-normalized host-side, so no rsqrt rescaling is needed here.
    noise = noise_ref[...]                                             # (A, T)
    g = [[None] * N_AGENTS for _ in range(N_AGENTS)]
    for i in range(N_AGENTS):
        for j in range(i, N_AGENTS):
            v = jnp.sum(b[i] * b[j], axis=0, keepdims=True)            # (1, T)
            if i == j:
                v = v + noise[i:i + 1, :] * NOISE_COEF                 # diag noise
            v = jnp.maximum(v, 0.0) + EPS                              # relu + EPS
            g[i][j] = v
            g[j][i] = v

    det = _sym_det(g)                                                  # (1, T)
    logdet = jnp.log(det + EPS)                                        # (1, T)

    qs = jnp.clip(qs_ref[...], Q_MIN, Q_MAX)                           # (A, T)
    q_sum = jnp.sum(qs, axis=0, keepdims=True)                         # (1, T)

    out_ref[...] = q_sum + LOGDET_COEF * logdet                        # lane-dense store


@functools.partial(jax.jit, static_argnames=("tile",))
def qdpp_mixer_forward(agent_qs, states, actions, b_weight, noise, *, tile=4096):
    """agent_qs/states/actions: (n1, n2, n_agents); returns (n1, n2, 1)."""
    n1, n2, _ = agent_qs.shape
    n_flat = n1 * n2

    # Discrete-branch index-layout invariant (agent i addresses rows [30i, 30i+30) only);
    # the per-agent 30-row gather below depends on it.
    assert BIAS_BASE == STATE_NUM * N_ACTIONS
    assert b_weight.shape == (NUM_EMB, EMBED_DIM)

    # ---- tiny host glue: local index arithmetic + agent-major transposes (~48 B/row) ----
    # TODO(synk): these (N, A) -> (A, N) transposes are separate XLA HBM passes; folding
    # them into the kernel needs an in-kernel (T, 4) -> (4, T) transpose (pltpu.einshape),
    # left out here to keep lowering risk at zero.
    qs_t = agent_qs.reshape(n_flat, N_AGENTS).astype(jnp.float32).T        # (A, N)
    states_i = states.astype(jnp.int32).reshape(n_flat, STATE_DIM)
    actions_i = actions.astype(jnp.int32).reshape(n_flat, N_AGENTS)
    idx_t = (states_i * N_ACTIONS + actions_i).T                           # (A, N), values in [0, 30)
    noise_t = noise.reshape(n_flat, N_AGENTS).astype(jnp.float32).T        # (A, N)
    # TODO(synk): noise could be generated in-kernel via pltpu.prng_* (drops this input),
    # but then it no longer bit-matches the pure-JAX reference used for validation.

    # ---- pre-normalized per-agent table blocks: (A, D, E_PAD), table3d[a] = W_a^T ----
    w = b_weight.astype(jnp.float32)
    w = w / jnp.maximum(jnp.linalg.norm(w, axis=1, keepdims=True), 1e-12)  # == F.normalize(dim=1)
    table3d = jnp.transpose(w.reshape(N_AGENTS, BIAS_BASE, EMBED_DIM), (0, 2, 1))  # (A, D, 30)
    table3d = jnp.pad(table3d, ((0, 0), (0, 0), (0, E_PAD - BIAS_BASE)))           # (A, D, 32)

    # ---- static tile / grid: lane-aligned tile capped at the (128-rounded) batch size.
    # No full-array padding: the last partial block uses Pallas edge-block masking; the
    # unspecified padded lanes never mix with valid lanes (no cross-lane reductions) and
    # are sliced off below.  No forced >=2-block split: it only pays on 2-TC chips and
    # real batches already give multi-step grids at tile=4096.
    tile_req = max(128, 128 * (int(tile) // 128))
    tile_eff = min(tile_req, 128 * pl.cdiv(n_flat, 128))
    n_blocks = pl.cdiv(n_flat, tile_eff)

    q = pl.pallas_call(
        qdpp_mixer_kernel,
        out_shape=jax.ShapeDtypeStruct((1, n_flat), jnp.float32),
        grid_spec=pltpu.PrefetchScalarGridSpec(
            num_scalar_prefetch=0,
            grid=(n_blocks,),
            in_specs=[
                # whole per-agent table stack (~16 KB), constant block -> resident in VMEM
                pl.BlockSpec((N_AGENTS, EMBED_DIM, E_PAD), lambda i: (0, 0, 0)),
                pl.BlockSpec((N_AGENTS, tile_eff), lambda i: (0, i)),
                pl.BlockSpec((N_AGENTS, tile_eff), lambda i: (0, i)),
                pl.BlockSpec((N_AGENTS, tile_eff), lambda i: (0, i)),
            ],
            out_specs=pl.BlockSpec((1, tile_eff), lambda i: (0, i)),        # lane-dense output
        ),
        compiler_params=pltpu.CompilerParams(
            dimension_semantics=("parallel",)),
    )(table3d, idx_t, qs_t, noise_t)

    return q[0].reshape(n1, n2, 1)


def _reference_forward(agent_qs, states, actions, b_weight, noise):
    """Pure-JAX reference mirroring the PyTorch forward (discrete branch)."""
    n1, n2, _ = agent_qs.shape
    n_flat = n1 * n2
    qs = jnp.clip(agent_qs.reshape(n_flat, N_AGENTS), Q_MIN, Q_MAX)
    states_i = states.astype(jnp.int32).reshape(n_flat, STATE_DIM)
    actions_i = actions.astype(jnp.int32).reshape(n_flat, N_AGENTS)
    state_bias = (BIAS_BASE * jnp.arange(N_AGENTS, dtype=jnp.int32))[None, :]
    idx = states_i * N_ACTIONS + actions_i + state_bias
    B = jnp.take(b_weight, idx, axis=0)
    B = B / jnp.maximum(jnp.linalg.norm(B, axis=2, keepdims=True), 1e-12)
    BBT = jnp.einsum("nik,njk->nij", B, B)
    BBT = BBT + jnp.eye(N_AGENTS)[None] * noise[:, :, None] * NOISE_COEF
    BBT = jnp.maximum(BBT, 0.0) + EPS
    logdet = jnp.log(jnp.linalg.det(BBT) + EPS)
    q = qs.sum(-1) + LOGDET_COEF * logdet
    return q.reshape(n1, n2, 1)


def _run_case(key, n1, n2, tile=4096):
    k_qs, k_st, k_ac, k_emb, k_noise = jax.random.split(key, 5)
    agent_qs = jax.random.normal(k_qs, (n1, n2, N_AGENTS), dtype=jnp.float32) * 3.0
    states = jax.random.randint(k_st, (n1, n2, STATE_DIM), 0, STATE_NUM)
    actions = jax.random.randint(k_ac, (n1, n2, N_AGENTS), 0, N_ACTIONS)

    # Embedding table: normal init then row-wise L2 normalization (matches __init__).
    b_weight = jax.random.normal(k_emb, (NUM_EMB, EMBED_DIM), dtype=jnp.float32)
    b_weight = b_weight / jnp.maximum(
        jnp.linalg.norm(b_weight, axis=1, keepdims=True), 1e-12)

    # th.rand diag noise (regenerated with JAX PRNG; same distribution, fixed seed).
    noise = jax.random.uniform(k_noise, (n1 * n2, N_AGENTS), dtype=jnp.float32)

    q_qdpp = qdpp_mixer_forward(agent_qs, states, actions, b_weight, noise, tile=tile)
    q_qdpp = jax.block_until_ready(q_qdpp)
    q_ref = _reference_forward(agent_qs, states, actions, b_weight, noise)

    assert q_qdpp.shape == (n1, n2, 1)
    assert jnp.allclose(q_qdpp, q_ref, rtol=2e-3, atol=2e-3), (
        float(jnp.max(jnp.abs(q_qdpp - q_ref))))
    return q_qdpp


if __name__ == "__main__":
    key = jax.random.PRNGKey(0)
    k_small, k_big = jax.random.split(key, 2)

    # Small demo shapes (batch=2, seq=8): a single partial 128-lane block (edge masking).
    _run_case(k_small, 2, 8)
    # Larger ragged batch with a small tile: multi-step (megacore-shardable) grid plus a
    # ragged trailing block — exercises the no-padding edge-block path.
    _run_case(k_big, 6, 300, tile=256)

    print("KERNEL_OK")
</pallas_src>

<mosaic_0001>
module attributes {stable_mosaic.version = 11 : i64} {
  func.func @qdpp_mixer_kernel(%arg0: i32, %arg1: memref<4x32x32xf32, #tpu.memory_space<vmem>>, %arg2: memref<4x128xi32, #tpu.memory_space<vmem>>, %arg3: memref<4x128xf32, #tpu.memory_space<vmem>>, %arg4: memref<4x128xf32, #tpu.memory_space<vmem>>, %arg5: memref<1x128xf32, #tpu.memory_space<vmem>>) attributes {dimension_semantics = [#tpu.dimension_semantics<parallel>], iteration_bounds = array<i64: 1>, scalar_prefetch = 0 : i64, scratch_operands = 0 : i64, tpu.core_type = #tpu.core_type<tc>, window_params = [{pipeline_mode = #tpu.pipeline_mode<synchronous>, transform_indices = @transform_0, window_bounds = array<i64: 4, 32, 32>}, {transform_indices = @transform_1, window_bounds = array<i64: 4, 128>}, {transform_indices = @transform_2, window_bounds = array<i64: 4, 128>}, {transform_indices = @transform_3, window_bounds = array<i64: 4, 128>}, {transform_indices = @transform_4, window_bounds = array<i64: 1, 128>}]} {
    %c0 = arith.constant 0 : index
    %c0_0 = arith.constant 0 : index
    %0 = vector.load %arg2[%c0, %c0_0] : memref<4x128xi32, #tpu.memory_space<vmem>>, vector<4x128xi32>
    %1 = tpu.iota {dimensions = array<i32: 0>} : vector<32x128xi32>
    %2 = vector.extract_strided_slice %0 {offsets = [0, 0], sizes = [1, 128], strides = [1, 1]} : vector<4x128xi32> to vector<1x128xi32>
    %3 = vector.broadcast %2 : vector<1x128xi32> to vector<32x128xi32>
    %4 = arith.cmpi eq, %1, %3 : vector<32x128xi32>
    %5 = arith.extui %4 : vector<32x128xi1> to vector<32x128xi32>
    %6 = arith.sitofp %5 : vector<32x128xi32> to vector<32x128xf32>
    %c0_1 = arith.constant 0 : index
    %c0_2 = arith.constant 0 : index
    %c0_3 = arith.constant 0 : index
    %7 = vector.load %arg1[%c0_1, %c0_2, %c0_3] : memref<4x32x32xf32, #tpu.memory_space<vmem>>, vector<1x32x32xf32>
    %8 = vector.shape_cast %7 : vector<1x32x32xf32> to vector<32x32xf32>
    %cst = arith.constant dense<0.000000e+00> : vector<32x128xf32>
    %9 = tpu.matmul %8, %6, %cst {dimension_numbers = #tpu.dot_dimension_numbers<[1], [0], [0], [1], [0, 0, 1, 1], [], []>} : vector<32x32xf32>, vector<32x128xf32>, vector<32x128xf32> -> vector<32x128xf32>
    %10 = vector.extract_strided_slice %0 {offsets = [1, 0], sizes = [1, 128], strides = [1, 1]} : vector<4x128xi32> to vector<1x128xi32>
    %11 = vector.broadcast %10 : vector<1x128xi32> to vector<32x128xi32>
    %12 = arith.cmpi eq, %1, %11 : vector<32x128xi32>
    %13 = arith.extui %12 : vector<32x128xi1> to vector<32x128xi32>
    %14 = arith.sitofp %13 : vector<32x128xi32> to vector<32x128xf32>
    %c1 = arith.constant 1 : index
    %c0_4 = arith.constant 0 : index
    %c0_5 = arith.constant 0 : index
    %15 = vector.load %arg1[%c1, %c0_4, %c0_5] : memref<4x32x32xf32, #tpu.memory_space<vmem>>, vector<1x32x32xf32>
    %16 = vector.shape_cast %15 : vector<1x32x32xf32> to vector<32x32xf32>
    %cst_6 = arith.constant dense<0.000000e+00> : vector<32x128xf32>
    %17 = tpu.matmul %16, %14, %cst_6 {dimension_numbers = #tpu.dot_dimension_numbers<[1], [0], [0], [1], [0, 0, 1, 1], [], []>} : vector<32x32xf32>, vector<32x128xf32>, vector<32x128xf32> -> vector<32x128xf32>
    %18 = vector.extract_strided_slice %0 {offsets = [2, 0], sizes = [1, 128], strides = [1, 1]} : vector<4x128xi32> to vector<1x128xi32>
    %19 = vector.broadcast %18 : vector<1x128xi32> to vector<32x128xi32>
    %20 = arith.cmpi eq, %1, %19 : vector<32x128xi32>
    %21 = arith.extui %20 : vector<32x128xi1> to vector<32x128xi32>
    %22 = arith.sitofp %21 : vector<32x128xi32> to vector<32x128xf32>
    %c2 = arith.constant 2 : index
    %c0_7 = arith.constant 0 : index
    %c0_8 = arith.constant 0 : index
    %23 = vector.load %arg1[%c2, %c0_7, %c0_8] : memref<4x32x32xf32, #tpu.memory_space<vmem>>, vector<1x32x32xf32>
    %24 = vector.shape_cast %23 : vector<1x32x32xf32> to vector<32x32xf32>
    %cst_9 = arith.constant dense<0.000000e+00> : vector<32x128xf32>
    %25 = tpu.matmul %24, %22, %cst_9 {dimension_numbers = #tpu.dot_dimension_numbers<[1], [0], [0], [1], [0, 0, 1, 1], [], []>} : vector<32x32xf32>, vector<32x128xf32>, vector<32x128xf32> -> vector<32x128xf32>
    %26 = vector.extract_strided_slice %0 {offsets = [3, 0], sizes = [1, 128], strides = [1, 1]} : vector<4x128xi32> to vector<1x128xi32>
    %27 = vector.broadcast %26 : vector<1x128xi32> to vector<32x128xi32>
    %28 = arith.cmpi eq, %1, %27 : vector<32x128xi32>
    %29 = arith.extui %28 : vector<32x128xi1> to vector<32x128xi32>
    %30 = arith.sitofp %29 : vector<32x128xi32> to vector<32x128xf32>
    %c3 = arith.constant 3 : index
    %c0_10 = arith.constant 0 : index
    %c0_11 = arith.constant 0 : index
    %31 = vector.load %arg1[%c3, %c0_10, %c0_11] : memref<4x32x32xf32, #tpu.memory_space<vmem>>, vector<1x32x32xf32>
    %32 = vector.shape_cast %31 : vector<1x32x32xf32> to vector<32x32xf32>
    %cst_12 = arith.constant dense<0.000000e+00> : vector<32x128xf32>
    %33 = tpu.matmul %32, %30, %cst_12 {dimension_numbers = #tpu.dot_dimension_numbers<[1], [0], [0], [1], [0, 0, 1, 1], [], []>} : vector<32x32xf32>, vector<32x128xf32>, vector<32x128xf32> -> vector<32x128xf32>
    %c0_13 = arith.constant 0 : index
    %c0_14 = arith.constant 0 : index
    %34 = vector.load %arg4[%c0_13, %c0_14] : memref<4x128xf32, #tpu.memory_space<vmem>>, vector<4x128xf32>
    %35 = arith.mulf %9, %9 : vector<32x128xf32>
    %cst_15 = arith.constant dense<0.000000e+00> : vector<128xf32>
    %36 = vector.multi_reduction <add>, %35, %cst_15 [0] : vector<32x128xf32> to vector<128xf32>
    %37 = vector.shape_cast %36 : vector<128xf32> to vector<1x128xf32>
    %38 = vector.extract_strided_slice %34 {offsets = [0, 0], sizes = [1, 128], strides = [1, 1]} : vector<4x128xf32> to vector<1x128xf32>
    %cst_16 = arith.constant 1.000000e-01 : f32
    %39 = vector.broadcast %cst_16 : f32 to vector<1x128xf32>
    %40 = arith.mulf %38, %39 : vector<1x128xf32>
    %41 = arith.addf %37, %40 : vector<1x128xf32>
    %cst_17 = arith.constant 0.000000e+00 : f32
    %42 = vector.broadcast %cst_17 : f32 to vector<1x128xf32>
    %43 = arith.maximumf %41, %42 : vector<1x128xf32>
    %cst_18 = arith.constant 9.99999993E-9 : f32
    %44 = vector.broadcast %cst_18 : f32 to vector<1x128xf32>
    %45 = arith.addf %43, %44 : vector<1x128xf32>
    %46 = arith.mulf %9, %17 : vector<32x128xf32>
    %cst_19 = arith.constant dense<0.000000e+00> : vector<128xf32>
    %47 = vector.multi_reduction <add>, %46, %cst_19 [0] : vector<32x128xf32> to vector<128xf32>
    %48 = vector.shape_cast %47 : vector<128xf32> to vector<1x128xf32>
    %cst_20 = arith.constant 0.000000e+00 : f32
    %49 = vector.broadcast %cst_20 : f32 to vector<1x128xf32>
    %50 = arith.maximumf %48, %49 : vector<1x128xf32>
    %cst_21 = arith.constant 9.99999993E-9 : f32
    %51 = vector.broadcast %cst_21 : f32 to vector<1x128xf32>
    %52 = arith.addf %50, %51 : vector<1x128xf32>
    %53 = arith.mulf %9, %25 : vector<32x128xf32>
    %cst_22 = arith.constant dense<0.000000e+00> : vector<128xf32>
    %54 = vector.multi_reduction <add>, %53, %cst_22 [0] : vector<32x128xf32> to vector<128xf32>
    %55 = vector.shape_cast %54 : vector<128xf32> to vector<1x128xf32>
    %cst_23 = arith.constant 0.000000e+00 : f32
    %56 = vector.broadcast %cst_23 : f32 to vector<1x128xf32>
    %57 = arith.maximumf %55, %56 : vector<1x128xf32>
    %cst_24 = arith.constant 9.99999993E-9 : f32
    %58 = vector.broadcast %cst_24 : f32 to vector<1x128xf32>
    %59 = arith.addf %57, %58 : vector<1x128xf32>
    %60 = arith.mulf %9, %33 : vector<32x128xf32>
    %cst_25 = arith.constant dense<0.000000e+00> : vector<128xf32>
    %61 = vector.multi_reduction <add>, %60, %cst_25 [0] : vector<32x128xf32> to vector<128xf32>
    %62 = vector.shape_cast %61 : vector<128xf32> to vector<1x128xf32>
    %cst_26 = arith.constant 0.000000e+00 : f32
    %63 = vector.broadcast %cst_26 : f32 to vector<1x128xf32>
    %64 = arith.maximumf %62, %63 : vector<1x128xf32>
    %cst_27 = arith.constant 9.99999993E-9 : f32
    %65 = vector.broadcast %cst_27 : f32 to vector<1x128xf32>
    %66 = arith.addf %64, %65 : vector<1x128xf32>
    %67 = arith.mulf %17, %17 : vector<32x128xf32>
    %cst_28 = arith.constant dense<0.000000e+00> : vector<128xf32>
    %68 = vector.multi_reduction <add>, %67, %cst_28 [0] : vector<32x128xf32> to vector<128xf32>
    %69 = vector.shape_cast %68 : vector<128xf32> to vector<1x128xf32>
    %70 = vector.extract_strided_slice %34 {offsets = [1, 0], sizes = [1, 128], strides = [1, 1]} : vector<4x128xf32> to vector<1x128xf32>
    %cst_29 = arith.constant 1.000000e-01 : f32
    %71 = vector.broadcast %cst_29 : f32 to vector<1x128xf32>
    %72 = arith.mulf %70, %71 : vector<1x128xf32>
    %73 = arith.addf %69, %72 : vector<1x128xf32>
    %cst_30 = arith.constant 0.000000e+00 : f32
    %74 = vector.broadcast %cst_30 : f32 to vector<1x128xf32>
    %75 = arith.maximumf %73, %74 : vector<1x128xf32>
    %cst_31 = arith.constant 9.99999993E-9 : f32
    %76 = vector.broadcast %cst_31 : f32 to vector<1x128xf32>
    %77 = arith.addf %75, %76 : vector<1x128xf32>
    %78 = arith.mulf %17, %25 : vector<32x128xf32>
    %cst_32 = arith.constant dense<0.000000e+00> : vector<128xf32>
    %79 = vector.multi_reduction <add>, %78, %cst_32 [0] : vector<32x128xf32> to vector<128xf32>
    %80 = vector.shape_cast %79 : vector<128xf32> to vector<1x128xf32>
    %cst_33 = arith.constant 0.000000e+00 : f32
    %81 = vector.broadcast %cst_33 : f32 to vector<1x128xf32>
    %82 = arith.maximumf %80, %81 : vector<1x128xf32>
    %cst_34 = arith.constant 9.99999993E-9 : f32
    %83 = vector.broadcast %cst_34 : f32 to vector<1x128xf32>
    %84 = arith.addf %82, %83 : vector<1x128xf32>
    %85 = arith.mulf %17, %33 : vector<32x128xf32>
    %cst_35 = arith.constant dense<0.000000e+00> : vector<128xf32>
    %86 = vector.multi_reduction <add>, %85, %cst_35 [0] : vector<32x128xf32> to vector<128xf32>
    %87 = vector.shape_cast %86 : vector<128xf32> to vector<1x128xf32>
    %cst_36 = arith.constant 0.000000e+00 : f32
    %88 = vector.broadcast %cst_36 : f32 to vector<1x128xf32>
    %89 = arith.maximumf %87, %88 : vector<1x128xf32>
    %cst_37 = arith.constant 9.99999993E-9 : f32
    %90 = vector.broadcast %cst_37 : f32 to vector<1x128xf32>
    %91 = arith.addf %89, %90 : vector<1x128xf32>
    %92 = arith.mulf %25, %25 : vector<32x128xf32>
    %cst_38 = arith.constant dense<0.000000e+00> : vector<128xf32>
    %93 = vector.multi_reduction <add>, %92, %cst_38 [0] : vector<32x128xf32> to vector<128xf32>
    %94 = vector.shape_cast %93 : vector<128xf32> to vector<1x128xf32>
    %95 = vector.extract_strided_slice %34 {offsets = [2, 0], sizes = [1, 128], strides = [1, 1]} : vector<4x128xf32> to vector<1x128xf32>
    %cst_39 = arith.constant 1.000000e-01 : f32
    %96 = vector.broadcast %cst_39 : f32 to vector<1x128xf32>
    %97 = arith.mulf %95, %96 : vector<1x128xf32>
    %98 = arith.addf %94, %97 : vector<1x128xf32>
    %cst_40 = arith.constant 0.000000e+00 : f32
    %99 = vector.broadcast %cst_40 : f32 to vector<1x128xf32>
    %100 = arith.maximumf %98, %99 : vector<1x128xf32>
    %cst_41 = arith.constant 9.99999993E-9 : f32
    %101 = vector.broadcast %cst_41 : f32 to vector<1x128xf32>
    %102 = arith.addf %100, %101 : vector<1x128xf32>
    %103 = arith.mulf %25, %33 : vector<32x128xf32>
    %cst_42 = arith.constant dense<0.000000e+00> : vector<128xf32>
    %104 = vector.multi_reduction <add>, %103, %cst_42 [0] : vector<32x128xf32> to vector<128xf32>
    %105 = vector.shape_cast %104 : vector<128xf32> to vector<1x128xf32>
    %cst_43 = arith.constant 0.000000e+00 : f32
    %106 = vector.broadcast %cst_43 : f32 to vector<1x128xf32>
    %107 = arith.maximumf %105, %106 : vector<1x128xf32>
    %cst_44 = arith.constant 9.99999993E-9 : f32
    %108 = vector.broadcast %cst_44 : f32 to vector<1x128xf32>
    %109 = arith.addf %107, %108 : vector<1x128xf32>
    %110 = arith.mulf %33, %33 : vector<32x128xf32>
    %cst_45 = arith.constant dense<0.000000e+00> : vector<128xf32>
    %111 = vector.multi_reduction <add>, %110, %cst_45 [0] : vector<32x128xf32> to vector<128xf32>
    %112 = vector.shape_cast %111 : vector<128xf32> to vector<1x128xf32>
    %113 = vector.extract_strided_slice %34 {offsets = [3, 0], sizes = [1, 128], strides = [1, 1]} : vector<4x128xf32> to vector<1x128xf32>
    %cst_46 = arith.constant 1.000000e-01 : f32
    %114 = vector.broadcast %cst_46 : f32 to vector<1x128xf32>
    %115 = arith.mulf %113, %114 : vector<1x128xf32>
    %116 = arith.addf %112, %115 : vector<1x128xf32>
    %cst_47 = arith.constant 0.000000e+00 : f32
    %117 = vector.broadcast %cst_47 : f32 to vector<1x128xf32>
    %118 = arith.maximumf %116, %117 : vector<1x128xf32>
    %cst_48 = arith.constant 9.99999993E-9 : f32
    %119 = vector.broadcast %cst_48 : f32 to vector<1x128xf32>
    %120 = arith.addf %118, %119 : vector<1x128xf32>
    %121 = arith.mulf %59, %91 : vector<1x128xf32>
    %122 = arith.mulf %84, %66 : vector<1x128xf32>
    %123 = arith.subf %121, %122 : vector<1x128xf32>
    %124 = arith.mulf %59, %109 : vector<1x128xf32>
    %125 = arith.mulf %102, %66 : vector<1x128xf32>
    %126 = arith.subf %124, %125 : vector<1x128xf32>
    %127 = arith.mulf %59, %120 : vector<1x128xf32>
    %128 = arith.mulf %109, %66 : vector<1x128xf32>
    %129 = arith.subf %127, %128 : vector<1x128xf32>
    %130 = arith.mulf %84, %109 : vector<1x128xf32>
    %131 = arith.mulf %102, %91 : vector<1x128xf32>
    %132 = arith.subf %130, %131 : vector<1x128xf32>
    %133 = arith.mulf %84, %120 : vector<1x128xf32>
    %134 = arith.mulf %109, %91 : vector<1x128xf32>
    %135 = arith.subf %133, %134 : vector<1x128xf32>
    %136 = arith.mulf %102, %120 : vector<1x128xf32>
    %137 = arith.mulf %109, %109 : vector<1x128xf32>
    %138 = arith.subf %136, %137 : vector<1x128xf32>
    %139 = arith.mulf %77, %138 : vector<1x128xf32>
    %140 = arith.mulf %84, %135 : vector<1x128xf32>
    %141 = arith.subf %139, %140 : vector<1x128xf32>
    %142 = arith.mulf %91, %132 : vector<1x128xf32>
    %143 = arith.addf %141, %142 : vector<1x128xf32>
    %144 = arith.mulf %52, %138 : vector<1x128xf32>
    %145 = arith.mulf %84, %129 : vector<1x128xf32>
    %146 = arith.subf %144, %145 : vector<1x128xf32>
    %147 = arith.mulf %91, %126 : vector<1x128xf32>
    %148 = arith.addf %146, %147 : vector<1x128xf32>
    %149 = arith.mulf %52, %135 : vector<1x128xf32>
    %150 = arith.mulf %77, %129 : vector<1x128xf32>
    %151 = arith.subf %149, %150 : vector<1x128xf32>
    %152 = arith.mulf %91, %123 : vector<1x128xf32>
    %153 = arith.addf %151, %152 : vector<1x128xf32>
    %154 = arith.mulf %52, %132 : vector<1x128xf32>
    %155 = arith.mulf %77, %126 : vector<1x128xf32>
    %156 = arith.subf %154, %155 : vector<1x128xf32>
    %157 = arith.mulf %84, %123 : vector<1x128xf32>
    %158 = arith.addf %156, %157 : vector<1x128xf32>
    %159 = arith.mulf %45, %143 : vector<1x128xf32>
    %160 = arith.mulf %52, %148 : vector<1x128xf32>
    %161 = arith.subf %159, %160 : vector<1x128xf32>
    %162 = arith.mulf %59, %153 : vector<1x128xf32>
    %163 = arith.addf %161, %162 : vector<1x128xf32>
    %164 = arith.mulf %66, %158 : vector<1x128xf32>
    %165 = arith.subf %163, %164 : vector<1x128xf32>
    %cst_49 = arith.constant 9.99999993E-9 : f32
    %166 = vector.broadcast %cst_49 : f32 to vector<1x128xf32>
    %167 = arith.addf %165, %166 : vector<1x128xf32>
    %168 = math.log %167 : vector<1x128xf32>
    %c0_50 = arith.constant 0 : index
    %c0_51 = arith.constant 0 : index
    %169 = vector.load %arg3[%c0_50, %c0_51] : memref<4x128xf32, #tpu.memory_space<vmem>>, vector<4x128xf32>
    %cst_52 = arith.constant -1.000000e+01 : f32
    %cst_53 = arith.constant 1.000000e+01 : f32
    %170 = vector.broadcast %cst_52 : f32 to vector<4x128xf32>
    %171 = arith.maximumf %170, %169 : vector<4x128xf32>
    %172 = vector.broadcast %cst_53 : f32 to vector<4x128xf32>
    %173 = arith.minimumf %172, %171 : vector<4x128xf32>
    %cst_54 = arith.constant dense<0.000000e+00> : vector<128xf32>
    %174 = vector.multi_reduction <add>, %173, %cst_54 [0] : vector<4x128xf32> to vector<128xf32>
    %175 = vector.shape_cast %174 : vector<128xf32> to vector<1x128xf32>
    %cst_55 = arith.constant 1.000000e+00 : f32
    %176 = vector.broadcast %cst_55 : f32 to vector<1x128xf32>
    %177 = arith.mulf %176, %168 : vector<1x128xf32>
    %178 = arith.addf %175, %177 : vector<1x128xf32>
    %c0_56 = arith.constant 0 : index
    %c0_57 = arith.constant 0 : index
    %179 = vector.load %arg5[%c0_56, %c0_57] : memref<1x128xf32, #tpu.memory_space<vmem>>, vector<1x128xf32>
    tpu.vector_store %arg5[%c0_56, %c0_57], %178 {strides = array<i32>} : memref<1x128xf32, #tpu.memory_space<vmem>>, vector<1x128xf32>,
    return
  }
  func.func @transform_0(%arg0: i32) -> (i32, i32, i32) {
    %c0_i32 = arith.constant 0 : i32
    %c0_i32_0 = arith.constant 0 : i32
    %c0_i32_1 = arith.constant 0 : i32
    %c0_i32_2 = arith.constant 0 : i32
    return %c0_i32, %c0_i32_0, %c0_i32_1 : i32, i32, i32
  }
  func.func @transform_1(%arg0: i32) -> (i32, i32) {
    %c0_i32 = arith.constant 0 : i32
    %c0_i32_0 = arith.constant 0 : i32
    return %c0_i32, %arg0 : i32, i32
  }
  func.func @transform_2(%arg0: i32) -> (i32, i32) {
    %c0_i32 = arith.constant 0 : i32
    %c0_i32_0 = arith.constant 0 : i32
    return %c0_i32, %arg0 : i32, i32
  }
  func.func @transform_3(%arg0: i32) -> (i32, i32) {
    %c0_i32 = arith.constant 0 : i32
    %c0_i32_0 = arith.constant 0 : i32
    return %c0_i32, %arg0 : i32, i32
  }
  func.func @transform_4(%arg0: i32) -> (i32, i32) {
    %c0_i32 = arith.constant 0 : i32
    %c0_i32_0 = arith.constant 0 : i32
    return %c0_i32, %arg0 : i32, i32
  }
}

</mosaic_0001>

<llo_original>
// kernel: squeeze.1
$region0: #{squeeze.1}
  %s0 = inlined_call_operand.vmem [shape: f32[16], index: 0, kind: input, shape index: {}]
  %s1 = inlined_call_operand.hbm [shape: f32[2,8,1], index: 1, kind: output, shape index: {}]
  $region1: #{squeeze.1} parent=0
    #allocation0 [shape = 'u8[1024]{0}', space=vmem, size = 0x400, scoped, tag = 'operand span for operand 1']
    #allocation1 [shape = 's32[1]{0}', space=sflag, size = 0x4, scoped, tag = 'scoped memory for squeeze.1']
    #allocation2 [shape = 'u8[4096]{0}', space=vmem, size = 0x1000, scoped, tag = 'scoped mem for output reshape']
    #allocation3 [shape = 'u8[4096]{0}', space=vmem, size = 0x1000, scoped, tag = 'scoped mem for input reshape']
    %2 = vsyncpa [#allocation1], 0
    %s4 = sshll.u32 1, 1
    %s5 = ssub.s32 %s4, 1
    %v6 = vld [vmem:[%s0] sm:%s5]
    %7 = vst [vmem:[#allocation3] sm:%s5] %v6
    %v8 = vld [vmem:[#allocation3] sm:$0x1]
    %vm9 = vcmask 64512
    %10 = vst.msk [vmem:[#allocation2] sm:$0x1] %vm9, %v8
    %v11 = vld [vmem:[#allocation3] sm:$0x1]
    %12 = vrot.lane.b32.xlu0 %v11, 120
    %v13 = vpop.permute.xlu0 %12
    %vm14 = vcmask 64512
    %s15 = scalar_lea.vmem [#allocation2], 1
    %16 = vst.msk [vmem:[%s15] sm:$0x1] %vm14, %v13
    %s18 = sshll.u32 1, 2
    %s19 = ssub.s32 %s18, 1
    %v21 = vld [vmem:[#allocation2] sm:%s19]
    %s22 = sshll.u32 1, 2
    %s23 = ssub.s32 %s22, 1
    %24 = vst [vmem:[#allocation0] sm:%s23] %v21
    %s26 = ssub.s32 32, 32
    %27 = vsyncadd [#allocation1], %s26
    %s29 = sshll.u32 [#allocation0], 4
    %s30 = int_to_ptr.vmem [resolvable:$true] %s29
    %32 = dma.vmem_to_hbm [thread:$0]  %s30, 32, %s1, [#allocation1]
    %33 = dma.done [#allocation1], 32
    %34 = vsyncpa [#allocation1], 1

// kernel: qdpp_mixer_forward.1
$region0: #{qdpp_mixer_forward.1}
  #allocation0 [shape = 'u32[]', space=smem, size = 0x4, offset = 0x4, fixed_abs, tag = 'smem constant byte address 0x4 - core index']
  #allocation1 [shape = 'u32[144,128]{1,0:T(1,128)}', space=vmem, size = 0x12000, scoped, tag = 'internal scratch']
  %s0 = inlined_call_operand.vmem [shape: f32[4,32,32], index: 0, kind: input, shape index: {}]
  %s1 = inlined_call_operand.vmem [shape: s32[4,16], index: 1, kind: input, shape index: {}]
  %s2 = inlined_call_operand.vmem [shape: f32[4,16], index: 2, kind: input, shape index: {}]
  %s3 = inlined_call_operand.vmem [shape: f32[4,16], index: 3, kind: input, shape index: {}]
  %s4 = inlined_call_operand.vmem [shape: f32[1,16], index: 4, kind: output, shape index: {}]
  %s5 = sld [smem:[#allocation0]]
  $region26: #{qdpp_mixer_forward.1} parent=0
    _
  %s7 = ssub.s32 1, %s5
  %s8 = scalar_select 0, %s7, %s5
  // Predicated region
  $region2: #{qdpp_mixer_forward.1} parent=0 // pred_check
    _
  $region3: #{qdpp_mixer_forward.1} parent=0 // pred_check_branch
    %10 = sbr.rel (0) target = $region5
  $region4: #{qdpp_mixer_forward.1} parent=0 // pred_region
    _
  $region5: #{qdpp_mixer_forward.1} parent=0 // pred_fallthru
    _
  // Predicated region
  $region6: #{qdpp_mixer_forward.1} parent=0 // pred_check
    _
  $region7: #{qdpp_mixer_forward.1} parent=0 // pred_check_branch
    %12 = sbr.rel (0) target = $region9
  $region8: #{qdpp_mixer_forward.1} parent=0 // pred_region
    _
  $region9: #{qdpp_mixer_forward.1} parent=0 // pred_fallthru
    _
  // Predicated region
  $region10: #{qdpp_mixer_forward.1} parent=0 // pred_check
    _
  $region11: #{qdpp_mixer_forward.1} parent=0 // pred_check_branch
    %14 = sbr.rel (0) target = $region13
  $region12: #{qdpp_mixer_forward.1} parent=0 // pred_region
    _
  $region13: #{qdpp_mixer_forward.1} parent=0 // pred_fallthru
    _
  // Predicated region
  $region14: #{qdpp_mixer_forward.1} parent=0 // pred_check
    _
  $region15: #{qdpp_mixer_forward.1} parent=0 // pred_check_branch
    %16 = sbr.rel (0) target = $region17
  $region16: #{qdpp_mixer_forward.1} parent=0 // pred_region
    _
  $region17: #{qdpp_mixer_forward.1} parent=0 // pred_fallthru
    _
  %v17 = vld [vmem:[%s1] sm:$0xf]
  %v18 = vlaneseq
  %v19 = vshrl.u32 %v18, 7
  %v20 = vadd.s32 %v19, 8
  %v21 = vadd.s32 %v19, 16
  %v22 = vadd.s32 %v19, 24
  %v23 = vlaneseq
  %v24 = vshrl.u32 %v23, 7
  %v25 = vsub.s32 0, %v24
  %v26 = vrot.slane %v17, %v25
  %vm27 = vcmp.eq.s32.totalorder %v19, %v26
  %vm28 = vcmp.eq.s32.totalorder %v20, %v26
  %vm29 = vcmp.eq.s32.totalorder %v21, %v26
  %vm30 = vcmp.eq.s32.totalorder %v22, %v26
  %v31 = vsel %vm27, 1, 0
  %v32 = vsel %vm28, 1, 0
  %v33 = vsel %vm29, 1, 0
  %v34 = vsel %vm30, 1, 0
  %v35 = vcvt.s32.f32 %v31
  %v36 = vcvt.s32.f32 %v32
  %v37 = vcvt.s32.f32 %v33
  %v38 = vcvt.s32.f32 %v34
  %v39 = vld [vmem:[%s0] sm:$0xff]
  %v40 = vld [vmem:[%s0 + $0x8] sm:$0xff]
  %v41 = vld [vmem:[%s0 + $0x10] sm:$0xff]
  %v42 = vld [vmem:[%s0 + $0x18] sm:$0xff]
  %vm43 = vcmask 261120
  %v45 = vsel %vm43, %v39, 0
  %v48 = vsel %vm43, %v40, 0
  %v51 = vsel %vm43, %v41, 0
  %v54 = vsel %vm43, %v42, 0
  %56 = vmatprep.subr.mxu0 0.0
  %57 = vmatpush1.msra.mxu0 0.0
  %58 = vmatprep.subr.mxu0 0.0
  %59 = vmatpush1.msra.mxu0 0.0
  %60 = vmatprep.subr.mxu0 0.0
  %61 = vmatpush1.msra.mxu0 0.0
  %62 = vmatprep.subr.mxu0 0.0
  %63 = vmatpush1.msra.mxu0 0.0
  %64 = vmatprep.subr.mxu0 0.0
  %65 = vmatpush1.msra.mxu0 0.0
  %66 = vmatprep.subr.mxu0 0.0
  %67 = vmatpush1.msra.mxu0 0.0
  %68 = vmatprep.subr.mxu0 0.0
  %69 = vmatpush1.msra.mxu0 0.0
  %70 = vmatprep.subr.mxu0 0.0
  %71 = vmatpush1.msra.mxu0 0.0
  %72 = vmatprep.subr.mxu0 0.0
  %73 = vmatpush1.msra.mxu0 0.0
  %74 = vmatprep.subr.mxu0 0.0
  %75 = vmatpush1.msra.mxu0 0.0
  %76 = vmatprep.subr.mxu0 0.0
  %77 = vmatpush1.msra.mxu0 0.0
  %78 = vmatprep.subr.mxu0 0.0
  %79 = vmatpush1.msra.mxu0 0.0
  %80 = vmatprep.subr.mxu0 0.0
  %81 = vmatpush1.msra.mxu0 %v38
  %82 = vmatprep.subr.mxu0 0.0
  %83 = vmatpush1.msra.mxu0 %v37
  %84 = vmatprep.subr.mxu0 0.0
  %85 = vmatpush1.msra.mxu0 %v36
  %86 = vmatprep.subr.mxu0 0.0
  %87 = vmatpush1.msra.mxu0 %v35
  %88 = vmatprep.subr.mxu0 0.0
  %89 = vmatpush2.msra.mxu0 0.0
  %90 = vmatprep.subr.mxu0 0.0
  %91 = vmatpush2.msra.mxu0 0.0
  %92 = vmatprep.subr.mxu0 0.0
  %93 = vmatpush2.msra.mxu0 0.0
  %94 = vmatprep.subr.mxu0 0.0
  %95 = vmatpush2.msra.mxu0 0.0
  %96 = vmatprep.subr.mxu0 0.0
  %97 = vmatpush2.msra.mxu0 0.0
  %98 = vmatprep.subr.mxu0 0.0
  %99 = vmatpush2.msra.mxu0 0.0
  %100 = vmatprep.subr.mxu0 0.0
  %101 = vmatpush2.msra.mxu0 0.0
  %102 = vmatprep.subr.mxu0 0.0
  %103 = vmatpush2.msra.mxu0 0.0
  %104 = vmatprep.subr.mxu0 0.0
  %105 = vmatpush2.msra.mxu0 0.0
  %106 = vmatprep.subr.mxu0 0.0
  %107 = vmatpush2.msra.mxu0 0.0
  %108 = vmatprep.subr.mxu0 0.0
  %109 = vmatpush2.msra.mxu0 0.0
  %110 = vmatprep.subr.mxu0 0.0
  %111 = vmatpush2.msra.mxu0 0.0
  %112 = vmatprep.subr.mxu0 0.0
  %113 = vmatpush2.msra.mxu0 0.0
  %114 = vmatprep.subr.mxu0 0.0
  %115 = vmatpush2.msra.mxu0 0.0
  %116 = vmatprep.subr.mxu0 0.0
  %117 = vmatpush2.msra.mxu0 0.0
  %118 = vmatprep.subr.mxu0 0.0
  %119 = vmatpush2.msra.mxu0 0.0
  %120 = vmatprep.mubr.f32.mxu0 0.0
  %121 = vmatmul.mubr.f32.gmra.mxu0 %v45
  %v122 = vpop.f32.mrf.mxu0
  %v123 = vadd.f32 0.0, %v122
  %v124 = vpop.f32.mrf.mxu0
  %125 = vmatprep.mubr.f32.mxu0 0.0
  %126 = vmatmul.mubr.f32.gmra.mxu0 %v48
  %v127 = vpop.f32.mrf.mxu0
  %v128 = vadd.f32 0.0, %v127
  %v129 = vpop.f32.mrf.mxu0
  %130 = vmatprep.mubr.f32.mxu0 0.0
  %131 = vmatmul.mubr.f32.gmra.mxu0 %v51
  %v132 = vpop.f32.mrf.mxu0
  %v133 = vadd.f32 0.0, %v132
  %v134 = vpop.f32.mrf.mxu0
  %135 = vmatprep.mubr.f32.mxu0 0.0
  %136 = vmatmul.mubr.f32.gmra.mxu0 %v54
  %v137 = vpop.f32.mrf.mxu0
  %v138 = vadd.f32 0.0, %v137
  %v139 = vpop.f32.mrf.mxu0
  %140 = vdwg.mxu0
  %v141 = vlaneseq
  %v142 = vshrl.u32 %v141, 7
  %v143 = vsub.s32 1, %v142
  %v144 = vrot.slane %v17, %v143
  %vm145 = vcmp.eq.s32.totalorder %v19, %v144
  %vm146 = vcmp.eq.s32.totalorder %v20, %v144
  %vm147 = vcmp.eq.s32.totalorder %v21, %v144
  %vm148 = vcmp.eq.s32.totalorder %v22, %v144
  %v149 = vsel %vm145, 1, 0
  %v150 = vsel %vm146, 1, 0
  %v151 = vsel %vm147, 1, 0
  %v152 = vsel %vm148, 1, 0
  %v153 = vcvt.s32.f32 %v149
  %v154 = vcvt.s32.f32 %v150
  %v155 = vcvt.s32.f32 %v151
  %v156 = vcvt.s32.f32 %v152
  %s157 = scalar_lea.vmem %s0, 32
  %v158 = vld [vmem:[%s157] sm:$0xff]
  %v159 = vld [vmem:[%s157 + $0x8] sm:$0xff]
  %v160 = vld [vmem:[%s157 + $0x10] sm:$0xff]
  %v161 = vld [vmem:[%s157 + $0x18] sm:$0xff]
  %v163 = vsel %vm43, %v158, 0
  %v166 = vsel %vm43, %v159, 0
  %v169 = vsel %vm43, %v160, 0
  %v172 = vsel %vm43, %v161, 0
  %174 = vmatprep.subr.mxu0 0.0
  %175 = vmatpush1.msra.mxu0 0.0
  %176 = vmatprep.subr.mxu0 0.0
  %177 = vmatpush1.msra.mxu0 0.0
  %178 = vmatprep.subr.mxu0 0.0
  %179 = vmatpush1.msra.mxu0 0.0
  %180 = vmatprep.subr.mxu0 0.0
  %181 = vmatpush1.msra.mxu0 0.0
  %182 = vmatprep.subr.mxu0 0.0
  %183 = vmatpush1.msra.mxu0 0.0
  %184 = vmatprep.subr.mxu0 0.0
  %185 = vmatpush1.msra.mxu0 0.0
  %186 = vmatprep.subr.mxu0 0.0
  %187 = vmatpush1.msra.mxu0 0.0
  %188 = vmatprep.subr.mxu0 0.0
  %189 = vmatpush1.msra.mxu0 0.0
  %190 = vmatprep.subr.mxu0 0.0
  %191 = vmatpush1.msra.mxu0 0.0
  %192 = vmatprep.subr.mxu0 0.0
  %193 = vmatpush1.msra.mxu0 0.0
  %194 = vmatprep.subr.mxu0 0.0
  %195 = vmatpush1.msra.mxu0 0.0
  %196 = vmatprep.subr.mxu0 0.0
  %197 = vmatpush1.msra.mxu0 0.0
  %198 = vmatprep.subr.mxu0 0.0
  %199 = vmatpush1.msra.mxu0 %v156
  %200 = vmatprep.subr.mxu0 0.0
  %201 = vmatpush1.msra.mxu0 %v155
  %202 = vmatprep.subr.mxu0 0.0
  %203 = vmatpush1.msra.mxu0 %v154
  %204 = vmatprep.subr.mxu0 0.0
  %205 = vmatpush1.msra.mxu0 %v153
  %206 = vmatprep.subr.mxu0 0.0
  %207 = vmatpush2.msra.mxu0 0.0
  %208 = vmatprep.subr.mxu0 0.0
  %209 = vmatpush2.msra.mxu0 0.0
  %210 = vmatprep.subr.mxu0 0.0
  %211 = vmatpush2.msra.mxu0 0.0
  %212 = vmatprep.subr.mxu0 0.0
  %213 = vmatpush2.msra.mxu0 0.0
  %214 = vmatprep.subr.mxu0 0.0
  %215 = vmatpush2.msra.mxu0 0.0
  %216 = vmatprep.subr.mxu0 0.0
  %217 = vmatpush2.msra.mxu0 0.0
  %218 = vmatprep.subr.mxu0 0.0
  %219 = vmatpush2.msra.mxu0 0.0
  %220 = vmatprep.subr.mxu0 0.0
  %221 = vmatpush2.msra.mxu0 0.0
  %222 = vmatprep.subr.mxu0 0.0
  %223 = vmatpush2.msra.mxu0 0.0
  %224 = vmatprep.subr.mxu0 0.0
  %225 = vmatpush2.msra.mxu0 0.0
  %226 = vmatprep.subr.mxu0 0.0
  %227 = vmatpush2.msra.mxu0 0.0
  %228 = vmatprep.subr.mxu0 0.0
  %229 = vmatpush2.msra.mxu0 0.0
  %230 = vmatprep.subr.mxu0 0.0
  %231 = vmatpush2.msra.mxu0 0.0
  %232 = vmatprep.subr.mxu0 0.0
  %233 = vmatpush2.msra.mxu0 0.0
  %234 = vmatprep.subr.mxu0 0.0
  %235 = vmatpush2.msra.mxu0 0.0
  %236 = vmatprep.subr.mxu0 0.0
  %237 = vmatpush2.msra.mxu0 0.0
  %238 = vmatprep.mubr.f32.mxu0 0.0
  %239 = vmatmul.mubr.f32.gmra.mxu0 %v163
  %v240 = vpop.f32.mrf.mxu0
  %v241 = vadd.f32 0.0, %v240
  %v242 = vpop.f32.mrf.mxu0
  %243 = vmatprep.mubr.f32.mxu0 0.0
  %244 = vmatmul.mubr.f32.gmra.mxu0 %v166
  %v245 = vpop.f32.mrf.mxu0
  %v246 = vadd.f32 0.0, %v245
  %v247 = vpop.f32.mrf.mxu0
  %248 = vmatprep.mubr.f32.mxu0 0.0
  %249 = vmatmul.mubr.f32.gmra.mxu0 %v169
  %v250 = vpop.f32.mrf.mxu0
  %v251 = vadd.f32 0.0, %v250
  %v252 = vpop.f32.mrf.mxu0
  %253 = vmatprep.mubr.f32.mxu0 0.0
  %254 = vmatmul.mubr.f32.gmra.mxu0 %v172
  %v255 = vpop.f32.mrf.mxu0
  %v256 = vadd.f32 0.0, %v255
  %v257 = vpop.f32.mrf.mxu0
  %258 = vdwg.mxu0
  %v259 = vlaneseq
  %v260 = vshrl.u32 %v259, 7
  %v261 = vsub.s32 2, %v260
  %v262 = vrot.slane %v17, %v261
  %vm263 = vcmp.eq.s32.totalorder %v19, %v262
  %vm264 = vcmp.eq.s32.totalorder %v20, %v262
  %vm265 = vcmp.eq.s32.totalorder %v21, %v262
  %vm266 = vcmp.eq.s32.totalorder %v22, %v262
  %v267 = vsel %vm263, 1, 0
  %v268 = vsel %vm264, 1, 0
  %v269 = vsel %vm265, 1, 0
  %v270 = vsel %vm266, 1, 0
  %v271 = vcvt.s32.f32 %v267
  %v272 = vcvt.s32.f32 %v268
  %v273 = vcvt.s32.f32 %v269
  %v274 = vcvt.s32.f32 %v270
  %s275 = scalar_lea.vmem %s0, 64
  %v276 = vld [vmem:[%s275] sm:$0xff]
  %v277 = vld [vmem:[%s275 + $0x8] sm:$0xff]
  %v278 = vld [vmem:[%s275 + $0x10] sm:$0xff]
  %v279 = vld [vmem:[%s275 + $0x18] sm:$0xff]
  %v281 = vsel %vm43, %v276, 0
  %v284 = vsel %vm43, %v277, 0
  %v287 = vsel %vm43, %v278, 0
  %v290 = vsel %vm43, %v279, 0
  %292 = vmatprep.subr.mxu0 0.0
  %293 = vmatpush1.msra.mxu0 0.0
  %294 = vmatprep.subr.mxu0 0.0
  %295 = vmatpush1.msra.mxu0 0.0
  %296 = vmatprep.subr.mxu0 0.0
  %297 = vmatpush1.msra.mxu0 0.0
  %298 = vmatprep.subr.mxu0 0.0
  %299 = vmatpush1.msra.mxu0 0.0
  %300 = vmatprep.subr.mxu0 0.0
  %301 = vmatpush1.msra.mxu0 0.0
  %302 = vmatprep.subr.mxu0 0.0
  %303 = vmatpush1.msra.mxu0 0.0
  %304 = vmatprep.subr.mxu0 0.0
  %305 = vmatpush1.msra.mxu0 0.0
  %306 = vmatprep.subr.mxu0 0.0
  %307 = vmatpush1.msra.mxu0 0.0
  %308 = vmatprep.subr.mxu0 0.0
  %309 = vmatpush1.msra.mxu0 0.0
  %310 = vmatprep.subr.mxu0 0.0
  %311 = vmatpush1.msra.mxu0 0.0
  %312 = vmatprep.subr.mxu0 0.0
  %313 = vmatpush1.msra.mxu0 0.0
  %314 = vmatprep.subr.mxu0 0.0
  %315 = vmatpush1.msra.mxu0 0.0
  %316 = vmatprep.subr.mxu0 0.0
  %317 = vmatpush1.msra.mxu0 %v274
  %318 = vmatprep.subr.mxu0 0.0
  %319 = vmatpush1.msra.mxu0 %v273
  %320 = vmatprep.subr.mxu0 0.0
  %321 = vmatpush1.msra.mxu0 %v272
  %322 = vmatprep.subr.mxu0 0.0
  %323 = vmatpush1.msra.mxu0 %v271
  %324 = vmatprep.subr.mxu0 0.0
  %325 = vmatpush2.msra.mxu0 0.0
  %326 = vmatprep.subr.mxu0 0.0
  %327 = vmatpush2.msra.mxu0 0.0
  %328 = vmatprep.subr.mxu0 0.0
  %329 = vmatpush2.msra.mxu0 0.0
  %330 = vmatprep.subr.mxu0 0.0
  %331 = vmatpush2.msra.mxu0 0.0
  %332 = vmatprep.subr.mxu0 0.0
  %333 = vmatpush2.msra.mxu0 0.0
  %334 = vmatprep.subr.mxu0 0.0
  %335 = vmatpush2.msra.mxu0 0.0
  %336 = vmatprep.subr.mxu0 0.0
  %337 = vmatpush2.msra.mxu0 0.0
  %338 = vmatprep.subr.mxu0 0.0
  %339 = vmatpush2.msra.mxu0 0.0
  %340 = vmatprep.subr.mxu0 0.0
  %341 = vmatpush2.msra.mxu0 0.0
  %342 = vmatprep.subr.mxu0 0.0
  %343 = vmatpush2.msra.mxu0 0.0
  %344 = vmatprep.subr.mxu0 0.0
  %345 = vmatpush2.msra.mxu0 0.0
  %346 = vmatprep.subr.mxu0 0.0
  %347 = vmatpush2.msra.mxu0 0.0
  %348 = vmatprep.subr.mxu0 0.0
  %349 = vmatpush2.msra.mxu0 0.0
  %350 = vmatprep.subr.mxu0 0.0
  %351 = vmatpush2.msra.mxu0 0.0
  %352 = vmatprep.subr.mxu0 0.0
  %353 = vmatpush2.msra.mxu0 0.0
  %354 = vmatprep.subr.mxu0 0.0
  %355 = vmatpush2.msra.mxu0 0.0
  %356 = vmatprep.mubr.f32.mxu0 0.0
  %357 = vmatmul.mubr.f32.gmra.mxu0 %v281
  %v358 = vpop.f32.mrf.mxu0
  %v359 = vadd.f32 0.0, %v358
  %v360 = vpop.f32.mrf.mxu0
  %361 = vmatprep.mubr.f32.mxu0 0.0
  %362 = vmatmul.mubr.f32.gmra.mxu0 %v284
  %v363 = vpop.f32.mrf.mxu0
  %v364 = vadd.f32 0.0, %v363
  %v365 = vpop.f32.mrf.mxu0
  %366 = vmatprep.mubr.f32.mxu0 0.0
  %367 = vmatmul.mubr.f32.gmra.mxu0 %v287
  %v368 = vpop.f32.mrf.mxu0
  %v369 = vadd.f32 0.0, %v368
  %v370 = vpop.f32.mrf.mxu0
  %371 = vmatprep.mubr.f32.mxu0 0.0
  %372 = vmatmul.mubr.f32.gmra.mxu0 %v290
  %v373 = vpop.f32.mrf.mxu0
  %v374 = vadd.f32 0.0, %v373
  %v375 = vpop.f32.mrf.mxu0
  %376 = vdwg.mxu0
  %v377 = vlaneseq
  %v378 = vshrl.u32 %v377, 7
  %v379 = vsub.s32 3, %v378
  %v380 = vrot.slane %v17, %v379
  %vm381 = vcmp.eq.s32.totalorder %v19, %v380
  %vm382 = vcmp.eq.s32.totalorder %v20, %v380
  %vm383 = vcmp.eq.s32.totalorder %v21, %v380
  %vm384 = vcmp.eq.s32.totalorder %v22, %v380
  %v385 = vsel %vm381, 1, 0
  %v386 = vsel %vm382, 1, 0
  %v387 = vsel %vm383, 1, 0
  %v388 = vsel %vm384, 1, 0
  %v389 = vcvt.s32.f32 %v385
  %v390 = vcvt.s32.f32 %v386
  %v391 = vcvt.s32.f32 %v387
  %v392 = vcvt.s32.f32 %v388
  %s393 = scalar_lea.vmem %s0, 96
  %v394 = vld [vmem:[%s393] sm:$0xff]
  %v395 = vld [vmem:[%s393 + $0x8] sm:$0xff]
  %v396 = vld [vmem:[%s393 + $0x10] sm:$0xff]
  %v397 = vld [vmem:[%s393 + $0x18] sm:$0xff]
  %v399 = vsel %vm43, %v394, 0
  %v402 = vsel %vm43, %v395, 0
  %v405 = vsel %vm43, %v396, 0
  %v408 = vsel %vm43, %v397, 0
  %410 = vmatprep.subr.mxu0 0.0
  %411 = vmatpush1.msra.mxu0 0.0
  %412 = vmatprep.subr.mxu0 0.0
  %413 = vmatpush1.msra.mxu0 0.0
  %414 = vmatprep.subr.mxu0 0.0
  %415 = vmatpush1.msra.mxu0 0.0
  %416 = vmatprep.subr.mxu0 0.0
  %417 = vmatpush1.msra.mxu0 0.0
  %418 = vmatprep.subr.mxu0 0.0
  %419 = vmatpush1.msra.mxu0 0.0
  %420 = vmatprep.subr.mxu0 0.0
  %421 = vmatpush1.msra.mxu0 0.0
  %422 = vmatprep.subr.mxu0 0.0
  %423 = vmatpush1.msra.mxu0 0.0
  %424 = vmatprep.subr.mxu0 0.0
  %425 = vmatpush1.msra.mxu0 0.0
  %426 = vmatprep.subr.mxu0 0.0
  %427 = vmatpush1.msra.mxu0 0.0
  %428 = vmatprep.subr.mxu0 0.0
  %429 = vmatpush1.msra.mxu0 0.0
  %430 = vmatprep.subr.mxu0 0.0
  %431 = vmatpush1.msra.mxu0 0.0
  %432 = vmatprep.subr.mxu0 0.0
  %433 = vmatpush1.msra.mxu0 0.0
  %434 = vmatprep.subr.mxu0 0.0
  %435 = vmatpush1.msra.mxu0 %v392
  %436 = vmatprep.subr.mxu0 0.0
  %437 = vmatpush1.msra.mxu0 %v391
  %438 = vmatprep.subr.mxu0 0.0
  %439 = vmatpush1.msra.mxu0 %v390
  %440 = vmatprep.subr.mxu0 0.0
  %441 = vmatpush1.msra.mxu0 %v389
  %442 = vmatprep.subr.mxu0 0.0
  %443 = vmatpush2.msra.mxu0 0.0
  %444 = vmatprep.subr.mxu0 0.0
  %445 = vmatpush2.msra.mxu0 0.0
  %446 = vmatprep.subr.mxu0 0.0
  %447 = vmatpush2.msra.mxu0 0.0
  %448 = vmatprep.subr.mxu0 0.0
  %449 = vmatpush2.msra.mxu0 0.0
  %450 = vmatprep.subr.mxu0 0.0
  %451 = vmatpush2.msra.mxu0 0.0
  %452 = vmatprep.subr.mxu0 0.0
  %453 = vmatpush2.msra.mxu0 0.0
  %454 = vmatprep.subr.mxu0 0.0
  %455 = vmatpush2.msra.mxu0 0.0
  %456 = vmatprep.subr.mxu0 0.0
  %457 = vmatpush2.msra.mxu0 0.0
  %458 = vmatprep.subr.mxu0 0.0
  %459 = vmatpush2.msra.mxu0 0.0
  %460 = vmatprep.subr.mxu0 0.0
  %461 = vmatpush2.msra.mxu0 0.0
  %462 = vmatprep.subr.mxu0 0.0
  %463 = vmatpush2.msra.mxu0 0.0
  %464 = vmatprep.subr.mxu0 0.0
  %465 = vmatpush2.msra.mxu0 0.0
  %466 = vmatprep.subr.mxu0 0.0
  %467 = vmatpush2.msra.mxu0 0.0
  %468 = vmatprep.subr.mxu0 0.0
  %469 = vmatpush2.msra.mxu0 0.0
  %470 = vmatprep.subr.mxu0 0.0
  %471 = vmatpush2.msra.mxu0 0.0
  %472 = vmatprep.subr.mxu0 0.0
  %473 = vmatpush2.msra.mxu0 0.0
  %474 = vmatprep.mubr.f32.mxu0 0.0
  %475 = vmatmul.mubr.f32.gmra.mxu0 %v399
  %v476 = vpop.f32.mrf.mxu0
  %v477 = vadd.f32 0.0, %v476
  %v478 = vpop.f32.mrf.mxu0
  %479 = vmatprep.mubr.f32.mxu0 0.0
  %480 = vmatmul.mubr.f32.gmra.mxu0 %v402
  %v481 = vpop.f32.mrf.mxu0
  %v482 = vadd.f32 0.0, %v481
  %v483 = vpop.f32.mrf.mxu0
  %484 = vmatprep.mubr.f32.mxu0 0.0
  %485 = vmatmul.mubr.f32.gmra.mxu0 %v405
  %v486 = vpop.f32.mrf.mxu0
  %v487 = vadd.f32 0.0, %v486
  %v488 = vpop.f32.mrf.mxu0
  %489 = vmatprep.mubr.f32.mxu0 0.0
  %490 = vmatmul.mubr.f32.gmra.mxu0 %v408
  %v491 = vpop.f32.mrf.mxu0
  %v492 = vadd.f32 0.0, %v491
  %v493 = vpop.f32.mrf.mxu0
  %494 = vdwg.mxu0
  %v495 = vld [vmem:[%s3] sm:$0xf]
  %v496 = vmul.f32 %v123, %v123
  %v497 = vmul.f32 %v128, %v128
  %v498 = vmul.f32 %v133, %v133
  %v499 = vmul.f32 %v138, %v138
  %v500 = vadd.f32 %v496, %v497
  %v501 = vadd.f32 %v500, %v498
  %v502 = vadd.f32 %v501, %v499
  %v503 = vrot.slane %v502, 4
  %v504 = vadd.f32 %v502, %v503
  %v505 = vrot.slane %v504, 2
  %v506 = vadd.f32 %v504, %v505
  %v507 = vrot.slane %v506, 1
  %v508 = vadd.f32 %v506, %v507
  %v509 = vmul.f32 %v495, 0.1
  %v510 = vadd.f32 %v508, %v509
  %v511 = vmax.f32 %v510, 0.0
  %v512 = vadd.f32 %v511, 1e-08
  %v513 = vmul.f32 %v123, %v241
  %v514 = vmul.f32 %v128, %v246
  %v515 = vmul.f32 %v133, %v251
  %v516 = vmul.f32 %v138, %v256
  %v517 = vadd.f32 %v513, %v514
  %v518 = vadd.f32 %v517, %v515
  %v519 = vadd.f32 %v518, %v516
  %v520 = vrot.slane %v519, 4
  %v521 = vadd.f32 %v519, %v520
  %v522 = vrot.slane %v521, 2
  %v523 = vadd.f32 %v521, %v522
  %v524 = vrot.slane %v523, 1
  %v525 = vadd.f32 %v523, %v524
  %v526 = vmax.f32 %v525, 0.0
  %v527 = vadd.f32 %v526, 1e-08
  %v528 = vmul.f32 %v123, %v359
  %v529 = vmul.f32 %v128, %v364
  %v530 = vmul.f32 %v133, %v369
  %v531 = vmul.f32 %v138, %v374
  %v532 = vadd.f32 %v528, %v529
  %v533 = vadd.f32 %v532, %v530
  %v534 = vadd.f32 %v533, %v531
  %v535 = vrot.slane %v534, 4
  %v536 = vadd.f32 %v534, %v535
  %v537 = vrot.slane %v536, 2
  %v538 = vadd.f32 %v536, %v537
  %v539 = vrot.slane %v538, 1
  %v540 = vadd.f32 %v538, %v539
  %v541 = vmax.f32 %v540, 0.0
  %v542 = vadd.f32 %v541, 1e-08
  %v543 = vmul.f32 %v123, %v477
  %v544 = vmul.f32 %v128, %v482
  %v545 = vmul.f32 %v133, %v487
  %v546 = vmul.f32 %v138, %v492
  %v547 = vadd.f32 %v543, %v544
  %v548 = vadd.f32 %v547, %v545
  %v549 = vadd.f32 %v548, %v546
  %v550 = vrot.slane %v549, 4
  %v551 = vadd.f32 %v549, %v550
  %v552 = vrot.slane %v551, 2
  %v553 = vadd.f32 %v551, %v552
  %v554 = vrot.slane %v553, 1
  %v555 = vadd.f32 %v553, %v554
  %v556 = vmax.f32 %v555, 0.0
  %v557 = vadd.f32 %v556, 1e-08
  %v558 = vmul.f32 %v241, %v241
  %v559 = vmul.f32 %v246, %v246
  %v560 = vmul.f32 %v251, %v251
  %v561 = vmul.f32 %v256, %v256
  %v562 = vadd.f32 %v558, %v559
  %v563 = vadd.f32 %v562, %v560
  %v564 = vadd.f32 %v563, %v561
  %v565 = vrot.slane %v564, 4
  %v566 = vadd.f32 %v564, %v565
  %v567 = vrot.slane %v566, 2
  %v568 = vadd.f32 %v566, %v567
  %v569 = vrot.slane %v568, 1
  %v570 = vadd.f32 %v568, %v569
  %v571 = vadd.f32 %v570, %v509
  %v572 = vmax.f32 %v571, 0.0
  %v573 = vadd.f32 %v572, 1e-08
  %v574 = vmul.f32 %v241, %v359
  %v575 = vmul.f32 %v246, %v364
  %v576 = vmul.f32 %v251, %v369
  %v577 = vmul.f32 %v256, %v374
  %v578 = vadd.f32 %v574, %v575
  %v579 = vadd.f32 %v578, %v576
  %v580 = vadd.f32 %v579, %v577
  %v581 = vrot.slane %v580, 4
  %v582 = vadd.f32 %v580, %v581
  %v583 = vrot.slane %v582, 2
  %v584 = vadd.f32 %v582, %v583
  %v585 = vrot.slane %v584, 1
  %v586 = vadd.f32 %v584, %v585
  %v587 = vmax.f32 %v586, 0.0
  %v588 = vadd.f32 %v587, 1e-08
  %v589 = vmul.f32 %v241, %v477
  %v590 = vmul.f32 %v246, %v482
  %v591 = vmul.f32 %v251, %v487
  %v592 = vmul.f32 %v256, %v492
  %v593 = vadd.f32 %v589, %v590
  %v594 = vadd.f32 %v593, %v591
  %v595 = vadd.f32 %v594, %v592
  %v596 = vrot.slane %v595, 4
  %v597 = vadd.f32 %v595, %v596
  %v598 = vrot.slane %v597, 2
  %v599 = vadd.f32 %v597, %v598
  %v600 = vrot.slane %v599, 1
  %v601 = vadd.f32 %v599, %v600
  %v602 = vmax.f32 %v601, 0.0
  %v603 = vadd.f32 %v602, 1e-08
  %v604 = vmul.f32 %v359, %v359
  %v605 = vmul.f32 %v364, %v364
  %v606 = vmul.f32 %v369, %v369
  %v607 = vmul.f32 %v374, %v374
  %v608 = vadd.f32 %v604, %v605
  %v609 = vadd.f32 %v608, %v606
  %v610 = vadd.f32 %v609, %v607
  %v611 = vrot.slane %v610, 4
  %v612 = vadd.f32 %v610, %v611
  %v613 = vrot.slane %v612, 2
  %v614 = vadd.f32 %v612, %v613
  %v615 = vrot.slane %v614, 1
  %v616 = vadd.f32 %v614, %v615
  %v617 = vadd.f32 %v616, %v509
  %v618 = vmax.f32 %v617, 0.0
  %v619 = vadd.f32 %v618, 1e-08
  %v620 = vmul.f32 %v359, %v477
  %v621 = vmul.f32 %v364, %v482
  %v622 = vmul.f32 %v369, %v487
  %v623 = vmul.f32 %v374, %v492
  %v624 = vadd.f32 %v620, %v621
  %v625 = vadd.f32 %v624, %v622
  %v626 = vadd.f32 %v625, %v623
  %v627 = vrot.slane %v626, 4
  %v628 = vadd.f32 %v626, %v627
  %v629 = vrot.slane %v628, 2
  %v630 = vadd.f32 %v628, %v629
  %v631 = vrot.slane %v630, 1
  %v632 = vadd.f32 %v630, %v631
  %v633 = vmax.f32 %v632, 0.0
  %v634 = vadd.f32 %v633, 1e-08
  %v635 = vmul.f32 %v477, %v477
  %v636 = vmul.f32 %v482, %v482
  %v637 = vmul.f32 %v487, %v487
  %v638 = vmul.f32 %v492, %v492
  %v639 = vadd.f32 %v635, %v636
  %v640 = vadd.f32 %v639, %v637
  %v641 = vadd.f32 %v640, %v638
  %v642 = vrot.slane %v641, 4
  %v643 = vadd.f32 %v641, %v642
  %v644 = vrot.slane %v643, 2
  %v645 = vadd.f32 %v643, %v644
  %v646 = vrot.slane %v645, 1
  %v647 = vadd.f32 %v645, %v646
  %v648 = vadd.f32 %v647, %v509
  %v649 = vmax.f32 %v648, 0.0
  %v650 = vadd.f32 %v649, 1e-08
  %v651 = vmul.f32 %v542, %v603
  %v652 = vmul.f32 %v588, %v557
  %v653 = vsub.f32 %v651, %v652
  %v654 = vmul.f32 %v542, %v634
  %v655 = vmul.f32 %v619, %v557
  %v656 = vsub.f32 %v654, %v655
  %v657 = vmul.f32 %v542, %v650
  %v658 = vmul.f32 %v634, %v557
  %v659 = vsub.f32 %v657, %v658
  %v660 = vmul.f32 %v588, %v634
  %v661 = vmul.f32 %v619, %v603
  %v662 = vsub.f32 %v660, %v661
  %v663 = vmul.f32 %v588, %v650
  %v664 = vmul.f32 %v634, %v603
  %v665 = vsub.f32 %v663, %v664
  %v667 = vrot.slane %v650, 1
  %v669 = vmul.f32 %v619, %v667
  %v670 = vmul.f32 %v634, %v634
  %v671 = vsub.f32 %v669, %v670
  %v673 = vrot.slane %v671, 1
  %v675 = vmul.f32 %v573, %v673
  %v676 = vmul.f32 %v588, %v665
  %v678 = vrot.slane %v676, 2
  %v680 = vsub.f32 %v675, %v678
  %v681 = vmul.f32 %v603, %v662
  %v683 = vrot.slane %v681, 1
  %v685 = vadd.f32 %v680, %v683
  %v686 = vmul.f32 %v527, %v671
  %v687 = vmul.f32 %v588, %v659
  %v689 = vrot.slane %v687, 1
  %v691 = vsub.f32 %v686, %v689
  %v692 = vmul.f32 %v603, %v656
  %v693 = vadd.f32 %v691, %v692
  %v694 = vmul.f32 %v527, %v665
  %v696 = vrot.slane %v659, 2
  %v698 = vmul.f32 %v573, %v696
  %v700 = vrot.slane %v698, 6
  %v702 = vsub.f32 %v694, %v700
  %v703 = vmul.f32 %v603, %v653
  %v704 = vadd.f32 %v702, %v703
  %v705 = vmul.f32 %v527, %v662
  %v707 = vrot.slane %v656, 1
  %v709 = vmul.f32 %v573, %v707
  %v711 = vrot.slane %v709, 7
  %v713 = vsub.f32 %v705, %v711
  %v714 = vmul.f32 %v588, %v653
  %v715 = vadd.f32 %v713, %v714
  %v717 = vrot.slane %v685, 1
  %v719 = vmul.f32 %v512, %v717
  %v720 = vmul.f32 %v527, %v693
  %v722 = vrot.slane %v720, 2
  %v724 = vsub.f32 %v719, %v722
  %v725 = vmul.f32 %v542, %v704
  %v727 = vrot.slane %v725, 3
  %v729 = vadd.f32 %v724, %v727
  %v730 = vmul.f32 %v557, %v715
  %v732 = vrot.slane %v730, 2
  %v734 = vsub.f32 %v729, %v732
  %v735 = vadd.f32 %v734, 1e-08
  %v736 = vlog2.pop %v735
  %v737 = vmul.f32 %v736, 0.6931472
  %v738 = vld [vmem:[%s2] sm:$0xf]
  %v739 = vmax.f32 %v738, -10.0
  %v740 = vmin.f32 %v739, 10.0
  %vm741 = vcmask 1043456
  %v742 = vsel %vm741, %v740, 0.0
  %v743 = vrot.slane %v742, 4
  %v744 = vadd.f32 %v742, %v743
  %v745 = vrot.slane %v744, 2
  %v746 = vadd.f32 %v744, %v745
  %v747 = vrot.slane %v746, 1
  %v748 = vadd.f32 %v746, %v747
  %v749 = vadd.f32 %v748, %v737
  %750 = vst [vmem:[%s4] sm:$0x1] %v749
  // Predicated region
  $region18: #{qdpp_mixer_forward.1} parent=0 // pred_check
    _
  $region19: #{qdpp_mixer_forward.1} parent=0 // pred_check_branch
    %752 = sbr.rel (0) target = $region21
  $region20: #{qdpp_mixer_forward.1} parent=0 // pred_region
    _
  $region21: #{qdpp_mixer_forward.1} parent=0 // pred_fallthru
    _
  // Predicated region
  $region22: #{qdpp_mixer_forward.1} parent=0 // pred_check
    _
  $region23: #{qdpp_mixer_forward.1} parent=0 // pred_check_branch
    %754 = sbr.rel (0) target = $region25
  $region24: #{qdpp_mixer_forward.1} parent=0 // pred_region
    _
  $region25: #{qdpp_mixer_forward.1} parent=0 // pred_fallthru
    _

</llo_original>
